<compile_context>
chip_gen: v5e
topology: v5e:2x2
jax: 0.10.0
libtpu: 0.0.40
codegen_flags: <defaults>
</compile_context>

<pallas_src>
import math
import functools

import jax
import jax.numpy as jnp
from jax import lax
from jax.experimental import pallas as pl
from jax.experimental.pallas import tpu as pltpu


def _curricular_tile_kernel(t_ref, x_ref, w_ref, lab_ref, ctm_ref, ftl_ref,
                            out_ref, origin_ref, *, s):
    """One (TM, TN) tile: bf16 MXU matmul + fused CurricularFace epilogue."""
    n = pl.program_id(0)                 # class-tile index (outer, slow axis)
    tn = w_ref.shape[0]

    # cos_theta[b, o] = sum_k xn[b, k] * wn[o, k]   (bf16 operands, f32 acc)
    cos = lax.dot_general(x_ref[...], w_ref[...], (((1,), (1,)), ((), ())),
                          preferred_element_type=jnp.float32)
    cos = jnp.clip(cos, -1.0, 1.0)                       # (TM, TN) f32

    origin_ref[...] = (cos * s).astype(origin_ref.dtype)  # origin_cos * s

    t_new = t_ref[0]                     # updated buffer t (scalar, SMEM)
    ctm = ctm_ref[...]                   # (TM, 1) cos(theta_target + m)
    ftl = ftl_ref[...]                   # (TM, 1) final_target_logit
    lab = lab_ref[...]                   # (TM, 1) int32 labels

    tm = cos.shape[0]
    col = n * tn + lax.broadcasted_iota(jnp.int32, (tm, tn), 1)
    onehot = col == lab                  # this row's label column in this tile?

    # cos_theta[mask] = hard * (t + hard);  then scatter_(1, label, final_target_logit)
    hard = cos * (t_new + cos)
    new = jnp.where(cos > ctm, hard, cos)
    new = jnp.where(onehot, ftl, new)
    out_ref[...] = (new * s).astype(out_ref.dtype)


def curricular_face(x, weight, label, t, *, m=0.5, s=64.0, tm=None, tn=None):
    B, D = x.shape
    C, K = weight.shape            # literal branch: "classes" are rows of kernel
    assert K == D, "literal F.linear(normalize(x), normalize(W)) needs in==out"

    cos_m = math.cos(m)
    sin_m = math.sin(m)
    threshold = math.cos(math.pi - m)
    mm = math.sin(math.pi - m) * m

    # ---------------- XLA prologue (hoisted out of the tiled loop) ----------
    # F.normalize(v, p=2, dim=1, eps=1e-12) == v / max(||v||_2, eps)
    xn = x / jnp.maximum(jnp.linalg.norm(x, axis=1, keepdims=True), 1e-12)
    wn = weight / jnp.maximum(jnp.linalg.norm(weight, axis=1, keepdims=True), 1e-12)
    xn16 = xn.astype(jnp.bfloat16)       # MXU-native operands, half the HBM bytes
    wn16 = wn.astype(jnp.bfloat16)

    label = label.astype(jnp.int32)
    # target_logit = cos_theta[b, label[b]]  (same bf16 products as the kernel)
    w_lab = wn16[label].astype(jnp.float32)                       # (B, K)
    target = jnp.sum(xn16.astype(jnp.float32) * w_lab, axis=1, keepdims=True)
    target = jnp.clip(target, -1.0, 1.0)                          # (B, 1)
    sin_t = jnp.sqrt(jnp.maximum(1.0 - target * target, 0.0))
    ctm = target * cos_m - sin_t * sin_m                          # cos(theta + m)
    ftl = jnp.where(target > threshold, ctm, target - mm)         # final_target_logit
    # running buffer:  t = mean(target)*0.01 + 0.99*t   (new t is used in hard mod)
    t_new = (jnp.mean(target) * 0.01 + 0.99 * t[0]).reshape(1).astype(jnp.float32)

    # ---------------- tile sizes --------------------------------------------
    if tm is None:
        tm = B if B <= 256 else 256
    if tn is None:
        tn = C if C <= 512 else 512
    assert B % tm == 0 and C % tn == 0
    grid = (C // tn, B // tm)      # class tiles outer -> W tile fetched once per class tile
    # TODO(synk): tile the contraction dim K as well for very large embedding dims.

    label2d = label.reshape(B, 1)
    kernel = functools.partial(_curricular_tile_kernel, s=float(s))

    out, origin = pl.pallas_call(
        kernel,
        grid=grid,
        in_specs=[
            pl.BlockSpec(memory_space=pltpu.MemorySpace.SMEM),     # t_new scalar
            pl.BlockSpec((tm, K), lambda n, b: (b, 0)),            # xn   (bf16)
            pl.BlockSpec((tn, K), lambda n, b: (n, 0)),            # wn   (bf16), reused over b
            pl.BlockSpec((tm, 1), lambda n, b: (b, 0)),            # labels
            pl.BlockSpec((tm, 1), lambda n, b: (b, 0)),            # cos(theta+m)
            pl.BlockSpec((tm, 1), lambda n, b: (b, 0)),            # final_target_logit
        ],
        out_specs=(
            pl.BlockSpec((tm, tn), lambda n, b: (b, n)),           # output logits * s
            pl.BlockSpec((tm, tn), lambda n, b: (b, n)),           # origin_cos * s
        ),
        out_shape=(
            jax.ShapeDtypeStruct((B, C), jnp.float32),
            jax.ShapeDtypeStruct((B, C), jnp.float32),
        ),
        compiler_params=pltpu.CompilerParams(
            dimension_semantics=("parallel", "parallel"),
            vmem_limit_bytes=32 * 1024 * 1024),
    )(t_new, xn16, wn16, label2d, ctm, ftl)
    return out, origin, t_new


def _reference(x, w, label, t, m=0.5, s=64.0):
    """Pure-JAX mirror of the PyTorch forward (matmul done at the kernel's
    bf16-operand / f32-accumulate precision so the comparison is tight)."""
    cos_m, sin_m = math.cos(m), math.sin(m)
    threshold, mm = math.cos(math.pi - m), math.sin(math.pi - m) * m
    xn = x / jnp.maximum(jnp.linalg.norm(x, axis=1, keepdims=True), 1e-12)
    wn = w / jnp.maximum(jnp.linalg.norm(w, axis=1, keepdims=True), 1e-12)
    cos_theta = lax.dot_general(xn.astype(jnp.bfloat16), wn.astype(jnp.bfloat16),
                                (((1,), (1,)), ((), ())),
                                preferred_element_type=jnp.float32)
    cos_theta = jnp.clip(cos_theta, -1.0, 1.0)
    origin = cos_theta
    target = cos_theta[jnp.arange(x.shape[0]), label][:, None]
    sin_t = jnp.sqrt(jnp.maximum(1.0 - target * target, 0.0))
    ctm = target * cos_m - sin_t * sin_m
    mask = cos_theta > ctm
    final = jnp.where(target > threshold, ctm, target - mm)
    t_new = jnp.mean(target) * 0.01 + 0.99 * t[0]
    hard = cos_theta * (t_new + cos_theta)
    new = jnp.where(mask, hard, cos_theta)
    onehot = jax.nn.one_hot(label, cos_theta.shape[1], dtype=bool)
    new = jnp.where(onehot, final, new)
    return new * s, origin * s, t_new


if __name__ == "__main__":
    B = 32
    D = 256          # in_features
    N = D            # out_features (== in_features, literal-fidelity requirement)

    key = jax.random.PRNGKey(0)
    kx, kw, kl = jax.random.split(key, 3)
    x = jax.random.normal(kx, (B, D), dtype=jnp.float32)
    weight = 0.01 * jax.random.normal(kw, (D, N), dtype=jnp.float32)  # normal_(std=0.01)
    label = jax.random.randint(kl, (B,), 0, N, dtype=jnp.int32)
    t = jnp.zeros((1,), dtype=jnp.float32)                            # buffer 't'

    fn = jax.jit(functools.partial(curricular_face, tm=16, tn=128))   # grid (2, 2)
    out, origin, t_new = fn(x, weight, label, t)
    jax.block_until_ready((out, origin, t_new))

    ref_out, ref_origin, ref_t = _reference(x, weight, label, t)
    assert out.shape == (B, N) and origin.shape == (B, N)
    assert jnp.allclose(out, ref_out, atol=1e-2, rtol=1e-2)
    assert jnp.allclose(origin, ref_origin, atol=1e-2, rtol=1e-2)
    assert jnp.allclose(t_new[0], ref_t, atol=1e-4)

    print("KERNEL_OK")
</pallas_src>

<mosaic_0001>
module attributes {stable_mosaic.version = 11 : i64} {
  func.func @_curricular_tile_kernel(%arg0: i32, %arg1: i32, %arg2: memref<1xf32, #tpu.memory_space<smem>>, %arg3: memref<16x256xbf16, #tpu.memory_space<vmem>>, %arg4: memref<128x256xbf16, #tpu.memory_space<vmem>>, %arg5: memref<16x1xi32, #tpu.memory_space<vmem>>, %arg6: memref<16x1xf32, #tpu.memory_space<vmem>>, %arg7: memref<16x1xf32, #tpu.memory_space<vmem>>, %arg8: memref<16x128xf32, #tpu.memory_space<vmem>>, %arg9: memref<16x128xf32, #tpu.memory_space<vmem>>) attributes {dimension_semantics = [#tpu.dimension_semantics<parallel>, #tpu.dimension_semantics<parallel>], iteration_bounds = array<i64: 2, 2>, scalar_prefetch = 0 : i64, scratch_operands = 0 : i64, tpu.core_type = #tpu.core_type<tc>, window_params = [{transform_indices = @transform_0, window_bounds = array<i64: 1>}, {transform_indices = @transform_1, window_bounds = array<i64: 16, 256>}, {transform_indices = @transform_2, window_bounds = array<i64: 128, 256>}, {transform_indices = @transform_3, window_bounds = array<i64: 16, 1>}, {transform_indices = @transform_4, window_bounds = array<i64: 16, 1>}, {transform_indices = @transform_5, window_bounds = array<i64: 16, 1>}, {transform_indices = @transform_6, window_bounds = array<i64: 16, 128>}, {transform_indices = @transform_7, window_bounds = array<i64: 16, 128>}]} {
    %c0 = arith.constant 0 : index
    %c0_0 = arith.constant 0 : index
    %0 = vector.load %arg3[%c0, %c0_0] : memref<16x256xbf16, #tpu.memory_space<vmem>>, vector<16x256xbf16>
    %c0_1 = arith.constant 0 : index
    %c0_2 = arith.constant 0 : index
    %1 = vector.load %arg4[%c0_1, %c0_2] : memref<128x256xbf16, #tpu.memory_space<vmem>>, vector<128x256xbf16>
    %cst = arith.constant dense<0.000000e+00> : vector<16x128xf32>
    %2 = tpu.matmul %0, %1, %cst {dimension_numbers = #tpu.dot_dimension_numbers<[1], [1], [0], [0], [0, 0, 1, 0], [], []>} : vector<16x256xbf16>, vector<128x256xbf16>, vector<16x128xf32> -> vector<16x128xf32>
    %cst_3 = arith.constant -1.000000e+00 : f32
    %cst_4 = arith.constant 1.000000e+00 : f32
    %3 = vector.broadcast %cst_3 : f32 to vector<16x128xf32>
    %4 = arith.maximumf %3, %2 : vector<16x128xf32>
    %5 = vector.broadcast %cst_4 : f32 to vector<16x128xf32>
    %6 = arith.minimumf %5, %4 : vector<16x128xf32>
    %cst_5 = arith.constant 6.400000e+01 : f32
    %7 = vector.broadcast %cst_5 : f32 to vector<16x128xf32>
    %8 = arith.mulf %6, %7 : vector<16x128xf32>
    %c0_6 = arith.constant 0 : index
    %c0_7 = arith.constant 0 : index
    %9 = vector.load %arg9[%c0_6, %c0_7] : memref<16x128xf32, #tpu.memory_space<vmem>>, vector<16x128xf32>
    tpu.vector_store %arg9[%c0_6, %c0_7], %8 {strides = array<i32>} : memref<16x128xf32, #tpu.memory_space<vmem>>, vector<16x128xf32>,
    %c0_8 = arith.constant 0 : index
    %10 = memref.load %arg2[%c0_8] : memref<1xf32, #tpu.memory_space<smem>>
    %c0_9 = arith.constant 0 : index
    %c0_10 = arith.constant 0 : index
    %11 = vector.load %arg6[%c0_9, %c0_10] : memref<16x1xf32, #tpu.memory_space<vmem>>, vector<16x1xf32>
    %c0_11 = arith.constant 0 : index
    %c0_12 = arith.constant 0 : index
    %12 = vector.load %arg7[%c0_11, %c0_12] : memref<16x1xf32, #tpu.memory_space<vmem>>, vector<16x1xf32>
    %c0_13 = arith.constant 0 : index
    %c0_14 = arith.constant 0 : index
    %13 = vector.load %arg5[%c0_13, %c0_14] : memref<16x1xi32, #tpu.memory_space<vmem>>, vector<16x1xi32>
    %c128_i32 = arith.constant 128 : i32
    %14 = arith.muli %arg0, %c128_i32 : i32
    %15 = tpu.iota {dimensions = array<i32: 1>} : vector<16x128xi32>
    %16 = vector.broadcast %14 : i32 to vector<16x128xi32>
    %17 = arith.addi %16, %15 : vector<16x128xi32>
    %18 = vector.broadcast %13 : vector<16x1xi32> to vector<16x128xi32>
    %19 = arith.cmpi eq, %17, %18 : vector<16x128xi32>
    %20 = vector.broadcast %10 : f32 to vector<16x128xf32>
    %21 = arith.addf %20, %6 : vector<16x128xf32>
    %22 = arith.mulf %6, %21 : vector<16x128xf32>
    %23 = vector.broadcast %11 : vector<16x1xf32> to vector<16x128xf32>
    %24 = arith.cmpf ogt, %6, %23 : vector<16x128xf32>
    %25 = arith.select %24, %22, %6 : vector<16x128xi1>, vector<16x128xf32>
    %26 = vector.shape_cast %12 : vector<16x1xf32> to vector<16x1xf32>
    %27 = vector.broadcast %26 : vector<16x1xf32> to vector<16x128xf32>
    %28 = arith.select %19, %27, %25 : vector<16x128xi1>, vector<16x128xf32>
    %cst_15 = arith.constant 6.400000e+01 : f32
    %29 = vector.broadcast %cst_15 : f32 to vector<16x128xf32>
    %30 = arith.mulf %28, %29 : vector<16x128xf32>
    %c0_16 = arith.constant 0 : index
    %c0_17 = arith.constant 0 : index
    %31 = vector.load %arg8[%c0_16, %c0_17] : memref<16x128xf32, #tpu.memory_space<vmem>>, vector<16x128xf32>
    tpu.vector_store %arg8[%c0_16, %c0_17], %30 {strides = array<i32>} : memref<16x128xf32, #tpu.memory_space<vmem>>, vector<16x128xf32>,
    return
  }
  func.func @transform_0(%arg0: i32, %arg1: i32) -> i32 {
    %c0_i32 = arith.constant 0 : i32
    %c0_i32_0 = arith.constant 0 : i32
    return %c0_i32 : i32
  }
  func.func @transform_1(%arg0: i32, %arg1: i32) -> (i32, i32) {
    %c0_i32 = arith.constant 0 : i32
    %c0_i32_0 = arith.constant 0 : i32
    return %arg1, %c0_i32 : i32, i32
  }
  func.func @transform_2(%arg0: i32, %arg1: i32) -> (i32, i32) {
    %c0_i32 = arith.constant 0 : i32
    %c0_i32_0 = arith.constant 0 : i32
    return %arg0, %c0_i32 : i32, i32
  }
  func.func @transform_3(%arg0: i32, %arg1: i32) -> (i32, i32) {
    %c0_i32 = arith.constant 0 : i32
    %c0_i32_0 = arith.constant 0 : i32
    return %arg1, %c0_i32 : i32, i32
  }
  func.func @transform_4(%arg0: i32, %arg1: i32) -> (i32, i32) {
    %c0_i32 = arith.constant 0 : i32
    %c0_i32_0 = arith.constant 0 : i32
    return %arg1, %c0_i32 : i32, i32
  }
  func.func @transform_5(%arg0: i32, %arg1: i32) -> (i32, i32) {
    %c0_i32 = arith.constant 0 : i32
    %c0_i32_0 = arith.constant 0 : i32
    return %arg1, %c0_i32 : i32, i32
  }
  func.func @transform_6(%arg0: i32, %arg1: i32) -> (i32, i32) {
    %c0_i32 = arith.constant 0 : i32
    return %arg1, %arg0 : i32, i32
  }
  func.func @transform_7(%arg0: i32, %arg1: i32) -> (i32, i32) {
    %c0_i32 = arith.constant 0 : i32
    return %arg1, %arg0 : i32, i32
  }
}

</mosaic_0001>

<llo_original>
// kernel: curricular_face.1
$region0: #{curricular_face.1}
  #allocation0 [shape = 'u32[]', space=smem, size = 0x4, offset = 0x4, fixed_abs, tag = 'smem constant byte address 0x4 - core index']
  #allocation1 [shape = 'u32[72,128]{1,0:T(1,128)}', space=vmem, size = 0x9000, scoped, tag = 'internal scratch']
  #allocation2 [shape = 'f32[1]{0:T(128)S(6)}', space=smem, size = 0x200, scoped, tag = 'scoped memory for curricular_face.1']
  %s0 = inlined_call_operand.<no memory space> [shape: f32[1], index: 0, kind: input, shape index: {}]
  %s1 = inlined_call_operand.vmem [shape: bf16[32,256], index: 1, kind: input, shape index: {}]
  %s2 = inlined_call_operand.vmem [shape: bf16[256,256], index: 2, kind: input, shape index: {}]
  %s3 = inlined_call_operand.vmem [shape: s32[32,1], index: 3, kind: input, shape index: {}]
  %s4 = inlined_call_operand.vmem [shape: f32[32,1], index: 4, kind: input, shape index: {}]
  %s5 = inlined_call_operand.vmem [shape: f32[32,1], index: 5, kind: input, shape index: {}]
  %s6 = inlined_call_operand.hbm [shape: f32[32,256], index: 6, kind: output, shape index: {0}]
  %s7 = inlined_call_operand.hbm [shape: f32[32,256], index: 7, kind: output, shape index: {1}]
  %8 = xla_tuple %s6, %s7
  %s9 = sld [smem:[#allocation0]]
  $region65: #{curricular_face.1} parent=0
    _
  %s11 = ssub.s32 1, %s9
  %s12 = scalar_select 0, %s11, %s9
  %13 = sst [smem:[#allocation2]] %s0
  $region1: #{curricular_face.1} parent=0
    #allocation3 [shape = 'u8[16384]{0}', space=vmem, size = 0x4000, scoped, tag = 'output window, operand 0']
    #allocation4 [shape = 's32[2]{0}', space=sflag, size = 0x8, scoped, tag = 'scoped memory for curricular_face.1']
    #allocation5 [shape = 'u8[16384]{0}', space=vmem, size = 0x4000, scoped, tag = 'output window, operand 1']
    #allocation6 [shape = 's32[2]{0}', space=sflag, size = 0x8, scoped, tag = 'scoped memory for curricular_face.1']
    %14 = vsyncpa [#allocation4], 0
    %s15 = scalar_lea.sflag [#allocation4], 1
    %16 = vsyncpa %s15, 0
    %17 = vsyncpa [#allocation6], 0
    %s18 = scalar_lea.sflag [#allocation6], 1
    %19 = vsyncpa %s18, 0
    loop: start=0, step=1, limit=6
    $region2: #{curricular_face.1} parent=1 // loop_pre_header
      _
    $region3: #{curricular_face.1} parent=1 // loop_header
      %s21 = sphi 0, %s25
      %p22 = scmp.ge.s32.totalorder %s21, 6
      %s28 = sphi 0, %s40
      %s29 = sphi 0, %s36
      %s30 = sphi 0, %s28
      %s31 = sphi 0, %s29
      %s32 = sphi 0, %s30
      %s33 = sphi 0, %s31
      %s41 = sphi 0, %s41
      %s43 = sphi 0, %s41
      %s44 = sphi 0, %s43
      %s58 = sphi 0, %s44
      %s64 = sphi 0, %s66
      %s67 = sphi 0, %s64
      %s68 = sphi 0, %s67
      %s84 = sphi 0, %s68
      %s90 = sphi 0, %s92
      %s93 = sphi 0, %s90
      %s94 = sphi 0, %s93
      %s110 = sphi 0, %s94
      %s116 = sphi 0, %s118
      %s119 = sphi 0, %s116
      %s120 = sphi 0, %s119
      %s136 = sphi 0, %s120
      %s142 = sphi 0, %s144
      %s145 = sphi 0, %s142
      %s146 = sphi 0, %s145
      %s162 = sphi 0, %s146
      %s168 = sphi 0, %s170
      %s171 = sphi 0, %s168
      %s172 = sphi 0, %s171
      %s188 = sphi 0, %s172
      %s196 = sphi 0, %s198
      %s199 = sphi 0, %s196
      %s200 = sphi 0, %s199
      %s216 = sphi 0, %s200
      %s224 = sphi 0, %s226
      %s227 = sphi 0, %s224
      %s228 = sphi 0, %s227
      %s244 = sphi 0, %s228
    $region4: #{curricular_face.1} parent=1 // loop_header_branch
      %24 = sbr.rel (%p22) target = $region8
    $region5: #{curricular_face.1} parent=1 // loop_body
      %s26 = ssub.s32 %s21, 1
      %s27 = ssub.s32 %s21, 2
      %s34 = sadd.s32 1, %s29
      %p35 = scmp.ge.s32.totalorder %s34, 2
      %s36 = scalar_select %p35, 0, %s34
      %s37 = sadd.s32 1, %s28
      %s38 = scalar_select %p35, %s37, %s28
      %p39 = scmp.ge.s32.totalorder %s38, 2
      %s40 = scalar_select %p39, 0, %s38
      %s42 = sadd.s32 %s41, 1
      %p45 = scmp.eq.s32.totalorder %s21, 3
      %p46 = scmp.ne.s32.totalorder %s41, %s43
      %p47 = scmp.eq.s32.totalorder %s21, 0
      %p48 = por %p46, %p47
      %p49 = scmp.ne.s32.totalorder %s41, %s43
      %p50 = scmp.eq.s32.totalorder %s26, 3
      %p51 = por %p49, %p50
      %p52 = scmp.ne.s32.totalorder %s43, %s44
      %p53 = scmp.eq.s32.totalorder %s26, 0
      %p54 = por %p52, %p53
      %p55 = scmp.ne.s32.totalorder %s43, %s44
      %p56 = scmp.eq.s32.totalorder %s27, 3
      %p57 = por %p55, %p56
      %p59 = scmp.ne.s32.totalorder %s44, %s58
      %p60 = scmp.eq.s32.totalorder %s27, 0
      %p61 = por %p59, %p60
      %s62 = ssub.s32 %s29, %s36
      %p63 = scmp.eq.s32.totalorder %s62, 0
      %s65 = sadd.s32 %s64, 1
      %s66 = scalar_select %p63, %s64, %s65
      %p69 = pneg %p63
      %p70 = scmp.eq.s32.totalorder %s21, 3
      %p71 = por %p69, %p70
      %p72 = scmp.ne.s32.totalorder %s64, %s67
      %p73 = scmp.eq.s32.totalorder %s21, 0
      %p74 = por %p72, %p73
      %p75 = scmp.ne.s32.totalorder %s64, %s67
      %p76 = scmp.eq.s32.totalorder %s26, 3
      %p77 = por %p75, %p76
      %p78 = scmp.ne.s32.totalorder %s67, %s68
      %p79 = scmp.eq.s32.totalorder %s26, 0
      %p80 = por %p78, %p79
      %p81 = scmp.ne.s32.totalorder %s67, %s68
      %p82 = scmp.eq.s32.totalorder %s27, 3
      %p83 = por %p81, %p82
      %p85 = scmp.ne.s32.totalorder %s68, %s84
      %p86 = scmp.eq.s32.totalorder %s27, 0
      %p87 = por %p85, %p86
      %s88 = ssub.s32 %s28, %s40
      %p89 = scmp.eq.s32.totalorder %s88, 0
      %s91 = sadd.s32 %s90, 1
      %s92 = scalar_select %p89, %s90, %s91
      %p95 = pneg %p89
      %p96 = scmp.eq.s32.totalorder %s21, 3
      %p97 = por %p95, %p96
      %p98 = scmp.ne.s32.totalorder %s90, %s93
      %p99 = scmp.eq.s32.totalorder %s21, 0
      %p100 = por %p98, %p99
      %p101 = scmp.ne.s32.totalorder %s90, %s93
      %p102 = scmp.eq.s32.totalorder %s26, 3
      %p103 = por %p101, %p102
      %p104 = scmp.ne.s32.totalorder %s93, %s94
      %p105 = scmp.eq.s32.totalorder %s26, 0
      %p106 = por %p104, %p105
      %p107 = scmp.ne.s32.totalorder %s93, %s94
      %p108 = scmp.eq.s32.totalorder %s27, 3
      %p109 = por %p107, %p108
      %p111 = scmp.ne.s32.totalorder %s94, %s110
      %p112 = scmp.eq.s32.totalorder %s27, 0
      %p113 = por %p111, %p112
      %s114 = ssub.s32 %s29, %s36
      %p115 = scmp.eq.s32.totalorder %s114, 0
      %s117 = sadd.s32 %s116, 1
      %s118 = scalar_select %p115, %s116, %s117
      %p121 = pneg %p115
      %p122 = scmp.eq.s32.totalorder %s21, 3
      %p123 = por %p121, %p122
      %p124 = scmp.ne.s32.totalorder %s116, %s119
      %p125 = scmp.eq.s32.totalorder %s21, 0
      %p126 = por %p124, %p125
      %p127 = scmp.ne.s32.totalorder %s116, %s119
      %p128 = scmp.eq.s32.totalorder %s26, 3
      %p129 = por %p127, %p128
      %p130 = scmp.ne.s32.totalorder %s119, %s120
      %p131 = scmp.eq.s32.totalorder %s26, 0
      %p132 = por %p130, %p131
      %p133 = scmp.ne.s32.totalorder %s119, %s120
      %p134 = scmp.eq.s32.totalorder %s27, 3
      %p135 = por %p133, %p134
      %p137 = scmp.ne.s32.totalorder %s120, %s136
      %p138 = scmp.eq.s32.totalorder %s27, 0
      %p139 = por %p137, %p138
      %s140 = ssub.s32 %s29, %s36
      %p141 = scmp.eq.s32.totalorder %s140, 0
      %s143 = sadd.s32 %s142, 1
      %s144 = scalar_select %p141, %s142, %s143
      %p147 = pneg %p141
      %p148 = scmp.eq.s32.totalorder %s21, 3
      %p149 = por %p147, %p148
      %p150 = scmp.ne.s32.totalorder %s142, %s145
      %p151 = scmp.eq.s32.totalorder %s21, 0
      %p152 = por %p150, %p151
      %p153 = scmp.ne.s32.totalorder %s142, %s145
      %p154 = scmp.eq.s32.totalorder %s26, 3
      %p155 = por %p153, %p154
      %p156 = scmp.ne.s32.totalorder %s145, %s146
      %p157 = scmp.eq.s32.totalorder %s26, 0
      %p158 = por %p156, %p157
      %p159 = scmp.ne.s32.totalorder %s145, %s146
      %p160 = scmp.eq.s32.totalorder %s27, 3
      %p161 = por %p159, %p160
      %p163 = scmp.ne.s32.totalorder %s146, %s162
      %p164 = scmp.eq.s32.totalorder %s27, 0
      %p165 = por %p163, %p164
      %s166 = ssub.s32 %s29, %s36
      %p167 = scmp.eq.s32.totalorder %s166, 0
      %s169 = sadd.s32 %s168, 1
      %s170 = scalar_select %p167, %s168, %s169
      %p173 = pneg %p167
      %p174 = scmp.eq.s32.totalorder %s21, 3
      %p175 = por %p173, %p174
      %p176 = scmp.ne.s32.totalorder %s168, %s171
      %p177 = scmp.eq.s32.totalorder %s21, 0
      %p178 = por %p176, %p177
      %p179 = scmp.ne.s32.totalorder %s168, %s171
      %p180 = scmp.eq.s32.totalorder %s26, 3
      %p181 = por %p179, %p180
      %p182 = scmp.ne.s32.totalorder %s171, %s172
      %p183 = scmp.eq.s32.totalorder %s26, 0
      %p184 = por %p182, %p183
      %p185 = scmp.ne.s32.totalorder %s171, %s172
      %p186 = scmp.eq.s32.totalorder %s27, 3
      %p187 = por %p185, %p186
      %p189 = scmp.ne.s32.totalorder %s172, %s188
      %p190 = scmp.eq.s32.totalorder %s27, 0
      %p191 = por %p189, %p190
      %s192 = ssub.s32 %s29, %s36
      %s193 = ssub.s32 %s28, %s40
      %s194 = sor.u32 %s192, %s193
      %p195 = scmp.eq.s32.totalorder %s194, 0
      %s197 = sadd.s32 %s196, 1
      %s198 = scalar_select %p195, %s196, %s197
      %p201 = pneg %p195
      %p202 = scmp.eq.s32.totalorder %s21, 3
      %p203 = por %p201, %p202
      %p204 = scmp.ne.s32.totalorder %s196, %s199
      %p205 = scmp.eq.s32.totalorder %s21, 0
      %p206 = por %p204, %p205
      %p207 = scmp.ne.s32.totalorder %s196, %s199
      %p208 = scmp.eq.s32.totalorder %s26, 3
      %p209 = por %p207, %p208
      %p210 = scmp.ne.s32.totalorder %s199, %s200
      %p211 = scmp.eq.s32.totalorder %s26, 0
      %p212 = por %p210, %p211
      %p213 = scmp.ne.s32.totalorder %s199, %s200
      %p214 = scmp.eq.s32.totalorder %s27, 3
      %p215 = por %p213, %p214
      %p217 = scmp.ne.s32.totalorder %s200, %s216
      %p218 = scmp.eq.s32.totalorder %s27, 0
      %p219 = por %p217, %p218
      %s220 = ssub.s32 %s29, %s36
      %s221 = ssub.s32 %s28, %s40
      %s222 = sor.u32 %s220, %s221
      %p223 = scmp.eq.s32.totalorder %s222, 0
      %s225 = sadd.s32 %s224, 1
      %s226 = scalar_select %p223, %s224, %s225
      %p229 = pneg %p223
      %p230 = scmp.eq.s32.totalorder %s21, 3
      %p231 = por %p229, %p230
      %p232 = scmp.ne.s32.totalorder %s224, %s227
      %p233 = scmp.eq.s32.totalorder %s21, 0
      %p234 = por %p232, %p233
      %p235 = scmp.ne.s32.totalorder %s224, %s227
      %p236 = scmp.eq.s32.totalorder %s26, 3
      %p237 = por %p235, %p236
      %p238 = scmp.ne.s32.totalorder %s227, %s228
      %p239 = scmp.eq.s32.totalorder %s26, 0
      %p240 = por %p238, %p239
      %p241 = scmp.ne.s32.totalorder %s227, %s228
      %p242 = scmp.eq.s32.totalorder %s27, 3
      %p243 = por %p241, %p242
      %p245 = scmp.ne.s32.totalorder %s228, %s244
      %p246 = scmp.eq.s32.totalorder %s27, 0
      %p247 = por %p245, %p246
      %p248 = scmp.le.s32.totalorder 1, %s21
      %p249 = scmp.lt.s32.totalorder %s21, 5
      %p250 = pnand %p248, %p249
      %p251 = pneg %p250
      // Predicated region
      $region9: #{curricular_face.1} parent=5 // pred_check
        _
      $region10: #{curricular_face.1} parent=5 // pred_check_branch
        %253 = sbr.rel (%p250) target = $region12
      $region11: #{curricular_face.1} parent=5 // pred_region
        %s254 = ssub.s32 %s21, 1
        // Predicated region
        $region13: #{curricular_face.1} parent=11 // pred_check
          %p255 = pneg %p54
        $region14: #{curricular_face.1} parent=11 // pred_check_branch
          %257 = sbr.rel (%p255) target = $region16
        $region15: #{curricular_face.1} parent=11 // pred_region
          _
        $region16: #{curricular_face.1} parent=11 // pred_fallthru
          _
      $region12: #{curricular_face.1} parent=5 // pred_fallthru
        _
      %p258 = scmp.lt.s32.totalorder %s21, 4
      // Predicated region
      $region17: #{curricular_face.1} parent=5 // pred_check
        %p259 = pneg %p258
      $region18: #{curricular_face.1} parent=5 // pred_check_branch
        %261 = sbr.rel (%p259) target = $region20
      $region19: #{curricular_face.1} parent=5 // pred_region
        // Predicated region
        $region21: #{curricular_face.1} parent=19 // pred_check
          %p262 = pneg %p74
        $region22: #{curricular_face.1} parent=19 // pred_check_branch
          %264 = sbr.rel (%p262) target = $region24
        $region23: #{curricular_face.1} parent=19 // pred_region
          %s265 = smul.u32 2, %s29
          %p266 = scmp.lt.s32.totalorder %s265, 3
          %s267 = scalar_select %p266, %s265, 3
          %s268 = smul.addr %s267, 2
          %s269 = smul.addr %s268, 4
          %s270 = scalar_lea.vmem %s1, %s269
          %s271 = smul.u32 2, %s29
        $region24: #{curricular_face.1} parent=19 // pred_fallthru
          _
        // Predicated region
        $region25: #{curricular_face.1} parent=19 // pred_check
          %p272 = pneg %p100
        $region26: #{curricular_face.1} parent=19 // pred_check_branch
          %274 = sbr.rel (%p272) target = $region28
        $region27: #{curricular_face.1} parent=19 // pred_region
          %s275 = smul.u32 16, %s28
          %p276 = scmp.lt.s32.totalorder %s275, 31
          %s277 = scalar_select %p276, %s275, 31
          %s278 = smul.addr %s277, 2
          %s279 = smul.addr %s278, 4
          %s280 = scalar_lea.vmem %s2, %s279
          %s281 = smul.u32 16, %s28
        $region28: #{curricular_face.1} parent=19 // pred_fallthru
          _
        // Predicated region
        $region29: #{curricular_face.1} parent=19 // pred_check
          %p282 = pneg %p126
        $region30: #{curricular_face.1} parent=19 // pred_check_branch
          %284 = sbr.rel (%p282) target = $region32
        $region31: #{curricular_face.1} parent=19 // pred_region
          %s285 = smul.u32 2, %s29
          %p286 = scmp.lt.s32.totalorder %s285, 3
          %s287 = scalar_select %p286, %s285, 3
          %s288 = smul.addr %s287, 8
          %s289 = scalar_lea.vmem %s3, %s288
          %s290 = smul.u32 2, %s29
        $region32: #{curricular_face.1} parent=19 // pred_fallthru
          _
        // Predicated region
        $region33: #{curricular_face.1} parent=19 // pred_check
          %p291 = pneg %p152
        $region34: #{curricular_face.1} parent=19 // pred_check_branch
          %293 = sbr.rel (%p291) target = $region36
        $region35: #{curricular_face.1} parent=19 // pred_region
          %s294 = smul.u32 2, %s29
          %p295 = scmp.lt.s32.totalorder %s294, 3
          %s296 = scalar_select %p295, %s294, 3
          %s297 = smul.addr %s296, 8
          %s298 = scalar_lea.vmem %s4, %s297
          %s299 = smul.u32 2, %s29
        $region36: #{curricular_face.1} parent=19 // pred_fallthru
          _
        // Predicated region
        $region37: #{curricular_face.1} parent=19 // pred_check
          %p300 = pneg %p178
        $region38: #{curricular_face.1} parent=19 // pred_check_branch
          %302 = sbr.rel (%p300) target = $region40
        $region39: #{curricular_face.1} parent=19 // pred_region
          %s303 = smul.u32 2, %s29
          %p304 = scmp.lt.s32.totalorder %s303, 3
          %s305 = scalar_select %p304, %s303, 3
          %s306 = smul.addr %s305, 8
          %s307 = scalar_lea.vmem %s5, %s306
          %s308 = smul.u32 2, %s29
        $region40: #{curricular_face.1} parent=19 // pred_fallthru
          _
      $region20: #{curricular_face.1} parent=5 // pred_fallthru
        _
      %p309 = scmp.le.s32.totalorder 1, %s21
      %p310 = scmp.lt.s32.totalorder %s21, 5
      %p311 = pnand %p309, %p310
      %p312 = pneg %p311
      // Predicated region
      $region41: #{curricular_face.1} parent=5 // pred_check
        _
      $region42: #{curricular_face.1} parent=5 // pred_check_branch
        %314 = sbr.rel (%p311) target = $region44
      $region43: #{curricular_face.1} parent=5 // pred_region
        %s315 = ssub.s32 %s21, 1
        %p316 = pneg %p54
        %p317 = pneg %p51
        %s318 = smul.u32 2, %s31
        %p319 = scmp.lt.s32.totalorder %s318, 3
        %s320 = scalar_select %p319, %s318, 3
        %s321 = smul.addr %s320, 2
        %s322 = smul.addr %s321, 4
        %s323 = scalar_lea.vmem %s1, %s322
        %p324 = pneg %p80
        %p325 = pneg %p77
        %s326 = smul.u32 16, %s30
        %p327 = scmp.lt.s32.totalorder %s326, 31
        %s328 = scalar_select %p327, %s326, 31
        %s329 = smul.addr %s328, 2
        %s330 = smul.addr %s329, 4
        %s331 = scalar_lea.vmem %s2, %s330
        %p332 = pneg %p106
        %p333 = pneg %p103
        %s334 = smul.u32 2, %s31
        %p335 = scmp.lt.s32.totalorder %s334, 3
        %s336 = scalar_select %p335, %s334, 3
        %s337 = smul.addr %s336, 8
        %s338 = scalar_lea.vmem %s3, %s337
        %p339 = pneg %p132
        %p340 = pneg %p129
        %s341 = smul.u32 2, %s31
        %p342 = scmp.lt.s32.totalorder %s341, 3
        %s343 = scalar_select %p342, %s341, 3
        %s344 = smul.addr %s343, 8
        %s345 = scalar_lea.vmem %s4, %s344
        %p346 = pneg %p158
        %p347 = pneg %p155
        %s348 = smul.u32 2, %s31
        %p349 = scmp.lt.s32.totalorder %s348, 3
        %s350 = scalar_select %p349, %s348, 3
        %s351 = smul.addr %s350, 8
        %s352 = scalar_lea.vmem %s5, %s351
        %p353 = pneg %p184
        %p354 = pneg %p181
        %p355 = pneg %p212
        %p356 = pneg %p209
        %s357 = sand.u32 %s199, 1
        %s358 = scalar_lea.sflag [#allocation4], %s357
        %s359 = sand.u32 %s199, 1
        %s360 = smul.addr %s359, 16
        %s361 = scalar_lea.vmem [#allocation3], %s360
        %p362 = pneg %p240
        %p363 = pneg %p237
        %s364 = sand.u32 %s227, 1
        %s365 = scalar_lea.sflag [#allocation6], %s364
        %s366 = sand.u32 %s227, 1
        %s367 = smul.addr %s366, 16
        %s368 = scalar_lea.vmem [#allocation5], %s367
        %s369 = smul.u32 2, %s31
        %p370 = scmp.lt.s32.totalorder %s369, 3
        %s371 = scalar_select %p370, %s369, 3
        %s372 = smul.addr %s371, 2
        %s373 = smul.addr %s372, 4
        %s374 = scalar_lea.vmem %s1, %s373
        %s375 = smul.u32 2, %s31
        %s376 = smul.u32 16, %s30
        %p377 = scmp.lt.s32.totalorder %s376, 31
        %s378 = scalar_select %p377, %s376, 31
        %s379 = smul.addr %s378, 2
        %s380 = smul.addr %s379, 4
        %s381 = scalar_lea.vmem %s2, %s380
        %s382 = smul.u32 16, %s30
        %s383 = smul.u32 2, %s31
        %p384 = scmp.lt.s32.totalorder %s383, 3
        %s385 = scalar_select %p384, %s383, 3
        %s386 = smul.addr %s385, 8
        %s387 = scalar_lea.vmem %s3, %s386
        %s388 = smul.u32 2, %s31
        %s389 = smul.u32 2, %s31
        %p390 = scmp.lt.s32.totalorder %s389, 3
        %s391 = scalar_select %p390, %s389, 3
        %s392 = smul.addr %s391, 8
        %s393 = scalar_lea.vmem %s4, %s392
        %s394 = smul.u32 2, %s31
        %s395 = smul.u32 2, %s31
        %p396 = scmp.lt.s32.totalorder %s395, 3
        %s397 = scalar_select %p396, %s395, 3
        %s398 = smul.addr %s397, 8
        %s399 = scalar_lea.vmem %s5, %s398
        %s400 = smul.u32 2, %s31
        %s401 = smul.u32 2, %s31
        %s402 = smul.u32 2, %s31
        %v403 = vld [vmem:[%s374] sm:$0xff]
        %v404 = vld [vmem:[%s374 + $0x8] sm:$0xff]
        %v405 = vld [vmem:[%s381] sm:$0xff]
        %v406 = vld [vmem:[%s381 + $0x8] sm:$0xff]
        %v407 = vld [vmem:[%s381 + $0x10] sm:$0xff]
        %v408 = vld [vmem:[%s381 + $0x18] sm:$0xff]
        %v409 = vld [vmem:[%s381 + $0x20] sm:$0xff]
        %v410 = vld [vmem:[%s381 + $0x28] sm:$0xff]
        %v411 = vld [vmem:[%s381 + $0x30] sm:$0xff]
        %v412 = vld [vmem:[%s381 + $0x38] sm:$0xff]
        %v413 = vld [vmem:[%s381 + $0x40] sm:$0xff]
        %v414 = vld [vmem:[%s381 + $0x48] sm:$0xff]
        %v415 = vld [vmem:[%s381 + $0x50] sm:$0xff]
        %v416 = vld [vmem:[%s381 + $0x58] sm:$0xff]
        %v417 = vld [vmem:[%s381 + $0x60] sm:$0xff]
        %v418 = vld [vmem:[%s381 + $0x68] sm:$0xff]
        %v419 = vld [vmem:[%s381 + $0x70] sm:$0xff]
        %v420 = vld [vmem:[%s381 + $0x78] sm:$0xff]
        %v423 = vunpack.c.l.b16 %v403
        %v424 = vunpack.c.h.b16 %v403
        %v425 = vunpack.c.l.b16 %v404
        %v426 = vunpack.c.h.b16 %v404
        %v427 = vpack.c.b16 %v425, %v423
        %v428 = vpack.c.b16 %v426, %v424
        %v447 = vunpack.c.l.b16 %v405
        %v448 = vunpack.c.h.b16 %v405
        %v449 = vunpack.c.l.b16 %v406
        %v450 = vunpack.c.h.b16 %v406
        %v451 = vunpack.c.l.b16 %v407
        %v452 = vunpack.c.h.b16 %v407
        %v453 = vunpack.c.l.b16 %v408
        %v454 = vunpack.c.h.b16 %v408
        %v455 = vunpack.c.l.b16 %v409
        %v456 = vunpack.c.h.b16 %v409
        %v457 = vunpack.c.l.b16 %v410
        %v458 = vunpack.c.h.b16 %v410
        %v459 = vunpack.c.l.b16 %v411
        %v460 = vunpack.c.h.b16 %v411
        %v461 = vunpack.c.l.b16 %v412
        %v462 = vunpack.c.h.b16 %v412
        %v463 = vunpack.c.l.b16 %v413
        %v464 = vunpack.c.h.b16 %v413
        %v465 = vunpack.c.l.b16 %v414
        %v466 = vunpack.c.h.b16 %v414
        %v467 = vunpack.c.l.b16 %v415
        %v468 = vunpack.c.h.b16 %v415
        %v469 = vunpack.c.l.b16 %v416
        %v470 = vunpack.c.h.b16 %v416
        %v471 = vunpack.c.l.b16 %v417
        %v472 = vunpack.c.h.b16 %v417
        %v473 = vunpack.c.l.b16 %v418
        %v474 = vunpack.c.h.b16 %v418
        %v475 = vunpack.c.l.b16 %v419
        %v476 = vunpack.c.h.b16 %v419
        %v477 = vunpack.c.l.b16 %v420
        %v478 = vunpack.c.h.b16 %v420
        %v479 = vpack.c.b16 %v449, %v447
        %v480 = vpack.c.b16 %v450, %v448
        %v481 = vpack.c.b16 %v453, %v451
        %v482 = vpack.c.b16 %v454, %v452
        %v483 = vpack.c.b16 %v457, %v455
        %v484 = vpack.c.b16 %v458, %v456
        %v485 = vpack.c.b16 %v461, %v459
        %v486 = vpack.c.b16 %v462, %v460
        %v487 = vpack.c.b16 %v465, %v463
        %v488 = vpack.c.b16 %v466, %v464
        %v489 = vpack.c.b16 %v469, %v467
        %v490 = vpack.c.b16 %v470, %v468
        %v491 = vpack.c.b16 %v473, %v471
        %v492 = vpack.c.b16 %v474, %v472
        %v493 = vpack.c.b16 %v477, %v475
        %v494 = vpack.c.b16 %v478, %v476
        %511 = vmatpush.bf16.xpose.msra.mxu0 %v493
        %512 = vmatpush.bf16.xpose.msra.mxu0 %v491
        %513 = vmatpush.bf16.xpose.msra.mxu0 %v489
        %514 = vmatpush.bf16.xpose.msra.mxu0 %v487
        %515 = vmatpush.bf16.xpose.msra.mxu0 %v485
        %516 = vmatpush.bf16.xpose.msra.mxu0 %v483
        %517 = vmatpush.bf16.xpose.msra.mxu0 %v481
        %518 = vmatpush.bf16.xpose.msra.mxu0 %v479
        %519 = vmatmul.bf16.gmra.mxu0 %v427
        %v520 = vpop.f32.mrf.mxu0
        %v521 = vadd.f32 0.0, %v520
        %v522 = vpop.f32.mrf.mxu0
        %v523 = vadd.f32 0.0, %v522
        %524 = vdwg.mxu0
        %525 = vmatpush.bf16.xpose.msra.mxu0 %v494
        %526 = vmatpush.bf16.xpose.msra.mxu0 %v492
        %527 = vmatpush.bf16.xpose.msra.mxu0 %v490
        %528 = vmatpush.bf16.xpose.msra.mxu0 %v488
        %529 = vmatpush.bf16.xpose.msra.mxu0 %v486
        %530 = vmatpush.bf16.xpose.msra.mxu0 %v484
        %531 = vmatpush.bf16.xpose.msra.mxu0 %v482
        %532 = vmatpush.bf16.xpose.msra.mxu0 %v480
        %533 = vmatmul.bf16.gmra.mxu0 %v428
        %v534 = vpop.f32.mrf.mxu0
        %v535 = vadd.f32 %v521, %v534
        %v536 = vpop.f32.mrf.mxu0
        %v537 = vadd.f32 %v523, %v536
        %538 = vdwg.mxu0
        %v539 = vmax.f32 %v535, -1.0
        %v540 = vmax.f32 %v537, -1.0
        %v541 = vmin.f32 %v539, 1.0
        %v542 = vmin.f32 %v540, 1.0
        %v543 = vmul.f32 %v541, 64.0
        %v544 = vmul.f32 %v542, 64.0
        %545 = vst [vmem:[%s368] sm:$0xff] %v543
        %546 = vst [vmem:[%s368 + $0x8] sm:$0xff] %v544
        %s547 = sld [smem:[#allocation2]]
        %v548 = vld [vmem:[%s393] sm:$0xff]
        %v549 = vld [vmem:[%s393 + $0x8] sm:$0xff]
        %v550 = vld [vmem:[%s399] sm:$0xff]
        %v551 = vld [vmem:[%s399 + $0x8] sm:$0xff]
        %v552 = vld [vmem:[%s387] sm:$0xff]
        %v553 = vld [vmem:[%s387 + $0x8] sm:$0xff]
        %s554 = smul.u32 %s30, 128
        %v555 = vlaneseq
        %v556 = vand.u32 %v555, 127
        %v557 = vstv %s554
        %v558 = vadd.s32 %v557, %v556
        %559 = vset.pattern.permute.xlu0 0
        %560 = vperm.xlu0 %559, %v552
        %v561 = vpop.permute.xlu0 %560
        %562 = vset.pattern.permute.xlu0 0
        %563 = vperm.xlu0 %562, %v553
        %v564 = vpop.permute.xlu0 %563
        %vm565 = vcmp.eq.s32.totalorder %v558, %v561
        %vm566 = vcmp.eq.s32.totalorder %v558, %v564
        %v567 = vstv %s547
        %v568 = vadd.f32 %v567, %v541
        %v569 = vadd.f32 %v567, %v542
        %v570 = vmul.f32 %v541, %v568
        %v571 = vmul.f32 %v542, %v569
        %573 = vset.pattern.permute.xlu0 0
        %574 = vperm.xlu0 %573, %v548
        %v575 = vpop.permute.xlu0 %574
        %578 = vset.pattern.permute.xlu0 0
        %579 = vperm.xlu0 %578, %v549
        %v580 = vpop.permute.xlu0 %579
        %vm582 = vcmp.gt.f32.partialorder %v541, %v575
        %vm583 = vcmp.gt.f32.partialorder %v542, %v580
        %v584 = vsel %vm582, %v570, %v541
        %v585 = vsel %vm583, %v571, %v542
        %587 = vset.pattern.permute.xlu0 0
        %588 = vperm.xlu0 %587, %v550
        %v589 = vpop.permute.xlu0 %588
        %592 = vset.pattern.permute.xlu0 0
        %593 = vperm.xlu0 %592, %v551
        %v594 = vpop.permute.xlu0 %593
        %v596 = vsel %vm565, %v589, %v584
        %v597 = vsel %vm566, %v594, %v585
        %v598 = vmul.f32 %v596, 64.0
        %v599 = vmul.f32 %v597, 64.0
        %600 = vst [vmem:[%s361] sm:$0xff] %v598
        %601 = vst [vmem:[%s361 + $0x8] sm:$0xff] %v599
        %s602 = sand.u32 %s199, 1
        %s603 = scalar_lea.sflag [#allocation4], %s602
        %s604 = sand.u32 %s199, 1
        %s605 = smul.addr %s604, 16
        %s606 = scalar_lea.vmem [#allocation3], %s605
        %s607 = sand.u32 %s227, 1
        %s608 = scalar_lea.sflag [#allocation6], %s607
        %s609 = sand.u32 %s227, 1
        %s610 = smul.addr %s609, 16
        %s611 = scalar_lea.vmem [#allocation5], %s610
        // Predicated region
        $region45: #{curricular_face.1} parent=43 // pred_check
          %p612 = pneg %p209
        $region46: #{curricular_face.1} parent=43 // pred_check_branch
          %614 = sbr.rel (%p612) target = $region48
        $region47: #{curricular_face.1} parent=43 // pred_region
          %s615 = smul.u32 2, %s31
          %617 = vsyncadd %s603, 0
          %s618 = smul.addr %s615, 2
          %s619 = sadd.s32 %s30, %s618
          %s620 = smul.addr %s619, 8
          %s621 = scalar_lea.hbm %s6, %s620
          %s622 = sshll.u32 %s606, 4
          %s623 = int_to_ptr.vmem [resolvable:$true] %s622
          %s624 = sshll.u32 %s621, 4
          %s625 = int_to_ptr.hbm [resolvable:$true] %s624
          %630 = dma.vmem_to_hbm [thread:$0]  %s623, 256, %s625, %s603, 128, 256, 8
        $region48: #{curricular_face.1} parent=43 // pred_fallthru
          _
        // Predicated region
        $region49: #{curricular_face.1} parent=43 // pred_check
          %p631 = pneg %p237
        $region50: #{curricular_face.1} parent=43 // pred_check_branch
          %633 = sbr.rel (%p631) target = $region52
        $region51: #{curricular_face.1} parent=43 // pred_region
          %s634 = smul.u32 2, %s31
          %636 = vsyncadd %s608, 0
          %s637 = smul.addr %s634, 2
          %s638 = sadd.s32 %s30, %s637
          %s639 = smul.addr %s638, 8
          %s640 = scalar_lea.hbm %s7, %s639
          %s641 = sshll.u32 %s611, 4
          %s642 = int_to_ptr.vmem [resolvable:$true] %s641
          %s643 = sshll.u32 %s640, 4
          %s644 = int_to_ptr.hbm [resolvable:$true] %s643
          %649 = dma.vmem_to_hbm [thread:$0]  %s642, 256, %s644, %s608, 128, 256, 8
        $region52: #{curricular_face.1} parent=43 // pred_fallthru
          _
      $region44: #{curricular_face.1} parent=5 // pred_fallthru
        _
      %p650 = scmp.le.s32.totalorder 2, %s21
      // Predicated region
      $region53: #{curricular_face.1} parent=5 // pred_check
        %p651 = pneg %p650
      $region54: #{curricular_face.1} parent=5 // pred_check_branch
        %653 = sbr.rel (%p651) target = $region56
      $region55: #{curricular_face.1} parent=5 // pred_region
        %s654 = ssub.s32 %s21, 2
        // Predicated region
        $region57: #{curricular_face.1} parent=55 // pred_check
          %p655 = pneg %p215
        $region58: #{curricular_face.1} parent=55 // pred_check_branch
          %657 = sbr.rel (%p655) target = $region60
        $region59: #{curricular_face.1} parent=55 // pred_region
          %s658 = sand.u32 %s200, 1
          %s659 = scalar_lea.sflag [#allocation4], %s658
          %s660 = sand.u32 %s200, 1
          %s661 = smul.addr %s660, 16
          %s662 = scalar_lea.vmem [#allocation3], %s661
          %664 = dma.done %s659, 256
        $region60: #{curricular_face.1} parent=55 // pred_fallthru
          _
        // Predicated region
        $region61: #{curricular_face.1} parent=55 // pred_check
          %p665 = pneg %p243
        $region62: #{curricular_face.1} parent=55 // pred_check_branch
          %667 = sbr.rel (%p665) target = $region64
        $region63: #{curricular_face.1} parent=55 // pred_region
          %s668 = sand.u32 %s228, 1
          %s669 = scalar_lea.sflag [#allocation6], %s668
          %s670 = sand.u32 %s228, 1
          %s671 = smul.addr %s670, 16
          %s672 = scalar_lea.vmem [#allocation5], %s671
          %674 = dma.done %s669, 256
        $region64: #{curricular_face.1} parent=55 // pred_fallthru
          _
      $region56: #{curricular_face.1} parent=5 // pred_fallthru
        _
    $region6: #{curricular_face.1} parent=1 // loop_footer
      %s25 = sadd.s32 1, %s21
    $region7: #{curricular_face.1} parent=1 // loop_footer_branch
      %20 = sbr.rel target = $region3
    $region8: #{curricular_face.1} parent=1 // loop_exit
      _
    %675 = vsyncpa [#allocation4], 1
    %s676 = scalar_lea.sflag [#allocation4], 1
    %677 = vsyncpa %s676, 1
    %678 = vsyncpa [#allocation6], 1
    %s679 = scalar_lea.sflag [#allocation6], 1
    %680 = vsyncpa %s679, 1

</llo_original>
